<compile_context>
chip_gen: v6e
topology: v6e:2x2x1
jax: 0.10.0
libtpu: 0.0.40
codegen_flags: <defaults>
</compile_context>

<pallas_src>
import functools

import numpy as np
import jax
import jax.numpy as jnp
from jax import lax
from jax.experimental import pallas as pl
from jax.experimental.pallas import tpu as pltpu

_EPS = 1e-5
_STATS_ROWS = 8          # partial-stat block padded to 8 sublanes for (8,128) tiling


# ----------------------------------------------------------------------------- in-kernel helpers
def _nchw_to_rows(x3):
    """(ipt, C, S) channel-major tile -> (ipt*S, C) row-major tile (on-chip relayout)."""
    ipt, c, s = x3.shape
    if ipt == 1:                                       # 2-D fast path (used by __main__)
        return x3.reshape(c, s).T
    return jnp.transpose(x3, (0, 2, 1)).reshape(ipt * s, c)


def _rows_to_nchw(rows, ipt, s):
    """(ipt*S, C) row-major tile -> (ipt, C, S) channel-major tile (on-chip relayout)."""
    _, c = rows.shape
    if ipt == 1:
        return rows.T.reshape(1, c, s)
    return jnp.transpose(rows.reshape(ipt, s, c), (0, 2, 1))


def _write_partial_stats(st_ref, h):
    """st_ref is an (8, C) block: row 0 = sum(h), row 1 = sum(h*h), rest zero.

    `h` must be the f32 accumulator (pre bf16 cast) so BN statistics stay exact.
    """
    s = jnp.sum(h, axis=0, keepdims=True)
    ss = jnp.sum(h * h, axis=0, keepdims=True)
    pad = jnp.zeros((_STATS_ROWS - 2, h.shape[1]), jnp.float32)
    st_ref[...] = jnp.concatenate([s, ss, pad], axis=0)


# ----------------------------------------------------------------------------- kernels
def _stage1_kernel(x_ref, w1_ref, h1_ref, st_ref):
    # NCHW tile -> rows (on-chip), 1x1 conv as a matmul (bf16 MXU operands, f32
    # accumulation), bf16 inter-stage store + f32 partial BN1 stats.
    x_rows = _nchw_to_rows(x_ref[...])                              # (Rt, Cin) f32
    h1 = jnp.dot(x_rows.astype(jnp.bfloat16), w1_ref[...],
                 preferred_element_type=jnp.float32)                # (Rt, Cmid) f32
    h1_ref[...] = h1.astype(h1_ref.dtype)
    _write_partial_stats(st_ref, h1)


def _stage2_kernel(h1_ref, s1_ref, t1_ref, w2_ref, h2_ref, st_ref, *, H, W):
    # BN1 (folded scale/shift) + ReLU, then grouped 3x3 conv as a single fused
    # big-K matmul over the 9 shifted taps.  Taps are cast to bf16 before the
    # concat so the dominant (Rt, 9*Cmid) patch lives in bf16; roll/mask stay f32
    # (safest sublane-roll path, negligible extra cost).
    a1 = jnp.maximum(h1_ref[...].astype(jnp.float32) * s1_ref[...] + t1_ref[...], 0.0)
    R, _ = a1.shape
    rows = lax.broadcasted_iota(jnp.int32, (R, 1), 0)               # hoisted once
    yy = (rows // W) % H
    xx = rows % W
    taps = []
    for ky in range(3):
        for kx in range(3):
            oy, ox = ky - 1, kx - 1
            d = oy * W + ox                                         # row shift of this tap
            # pltpu.roll runs on the XLU slot; in-bounds taps never wrap (tiles are
            # whole images); wrapped / cross-image rows coincide with the masked ones.
            shifted = a1 if d == 0 else pltpu.roll(a1, (-d) % R, 0)
            valid = ((yy + oy >= 0) & (yy + oy < H) &
                     (xx + ox >= 0) & (xx + ox < W))
            taps.append(jnp.where(valid, shifted, 0.0).astype(jnp.bfloat16))
    patch = jnp.concatenate(taps, axis=1)                           # (Rt, 9*Cmid) bf16
    h2 = jnp.dot(patch, w2_ref[...], preferred_element_type=jnp.float32)
    h2_ref[...] = h2.astype(h2_ref.dtype)
    _write_partial_stats(st_ref, h2)


def _stage3_kernel(h2_ref, s2_ref, t2_ref, w3_ref, st_ref):
    # Stats-only pass: h3 is computed in-register for BN3 statistics and never
    # written to HBM (stage 4 recomputes it bitwise-identically).
    a2 = jnp.maximum(h2_ref[...].astype(jnp.float32) * s2_ref[...] + t2_ref[...], 0.0)
    h3 = jnp.dot(a2.astype(jnp.bfloat16), w3_ref[...],
                 preferred_element_type=jnp.float32)
    _write_partial_stats(st_ref, h3)


def _stage4_kernel(h2_ref, s2_ref, t2_ref, w3_ref, s3_ref, t3_ref, x_ref, o_ref):
    # Recompute h3, BN3, identity shortcut (added in the original NCHW layout after
    # an on-chip rows->NCHW relayout), final ReLU, NCHW store.
    a2 = jnp.maximum(h2_ref[...].astype(jnp.float32) * s2_ref[...] + t2_ref[...], 0.0)
    h3 = jnp.dot(a2.astype(jnp.bfloat16), w3_ref[...],
                 preferred_element_type=jnp.float32)                # (Rt, Cout) f32
    bn3_rows = h3 * s3_ref[...] + t3_ref[...]
    ipt, _, s = o_ref.shape
    bn3_chw = _rows_to_nchw(bn3_rows, ipt, s)                       # (ipt, Cout, S)
    o_ref[...] = jnp.maximum(bn3_chw + x_ref[...], 0.0)


# ----------------------------------------------------------------------------- wrapper helpers
def _row_spec(rt, c):
    return pl.BlockSpec((rt, c), lambda t: (t, 0))


def _img_spec(ipt, c, s):
    return pl.BlockSpec((ipt, c, s), lambda t: (t, 0, 0))


def _resident_spec(shape):
    nd = len(shape)
    return pl.BlockSpec(shape, lambda t: (0,) * nd)   # constant -> stays VMEM-resident


def _stats_spec(c):
    return pl.BlockSpec((_STATS_ROWS, c), lambda t: (t, 0))


def _vmem_limit_bytes():
    # Generation-aware VMEM cap: ~3/4 of physical per TensorCore (~48 MiB on v7x's
    # 64 MiB, ~96 MiB on v5e/v6e's 128 MiB); conservative 32 MiB if the query fails.
    try:
        cap = int(getattr(pltpu.get_tpu_info(), "vmem_capacity_bytes", 0))
    except Exception:
        cap = 0
    if cap <= 0:
        return 32 * 1024 * 1024
    return int(min(cap * 3 // 4, 100 * 1024 * 1024))


def _fold_bn(stats, gamma, beta, m_total):
    # stats: (num_tiles*8, C); row 0 = sum, row 1 = sumsq per tile.  One-pass biased
    # variance (E[x^2] - E[x]^2), folded into per-channel scale/shift (f32).
    # NOTE: one-pass variance is cancellation-prone if |mean| >> std; fine here.
    c = stats.shape[-1]
    stats = stats.reshape(-1, _STATS_ROWS, c)
    s = jnp.sum(stats[:, 0, :], axis=0)
    ss = jnp.sum(stats[:, 1, :], axis=0)
    mean = s / m_total
    var = jnp.maximum(ss / m_total - mean * mean, 0.0)
    scale = gamma * lax.rsqrt(var + _EPS)
    shift = beta - mean * scale
    return (scale.reshape(1, -1).astype(jnp.float32),
            shift.reshape(1, -1).astype(jnp.float32))


def grouped_to_dense(wg, cardinality):
    # PyTorch grouped conv weight (Cout, Cin_per_group, 3, 3) -> dense block-diagonal
    # weight in (kh, kw, Cin, Cout) matmul layout.
    wg = np.asarray(wg)
    cout2, cpg, kh, kw = wg.shape
    cin2 = cpg * cardinality
    opg = cout2 // cardinality
    dense = np.zeros((kh, kw, cin2, cout2), np.float32)
    for o in range(cout2):
        g = o // opg
        dense[:, :, g * cpg:(g + 1) * cpg, o] = np.transpose(wg[o], (1, 2, 0))
    return jnp.asarray(dense)


# ----------------------------------------------------------------------------- forward
def bottleneck_forward(x_nchw, params, cardinality, images_per_tile=None):
    w1, g1, b1, wg2, g2, b2, w3, g3, b3 = params
    N, Cin, H, W = x_nchw.shape
    Cmid = w1.shape[0]
    Cout = w3.shape[0]
    assert Cin == Cout, "projection=None -> identity shortcut requires Cin == 4*out_channels"

    S = H * W                                    # rows per image
    assert S % 8 == 0, "H*W must be a multiple of 8 for sublane-aligned row tiles"

    vmem_limit = _vmem_limit_bytes()
    if images_per_tile is None:
        # Whole-image tiles (3x3 halo never crosses a tile).  Prefer: even tile count
        # (keeps both v7x TensorCores fed on the "parallel" grid axis), 16-row
        # alignment (bf16-friendly blocks), then the largest tile under the ~8K row
        # target and ~half the VMEM limit (heaviest, stage-4, footprint estimate).
        bytes_per_row = 8 * Cin + 8 * Cout + 4 * 2 * Cmid + 2 * 9 * Cmid * 2
        target_rows = max(S, min(8192, (vmem_limit // 2) // bytes_per_row))
        cands = [d for d in range(1, N + 1)
                 if N % d == 0 and d * S <= max(S, target_rows)]
        images_per_tile = max(
            cands, key=lambda d: ((N // d) % 2 == 0, (d * S) % 16 == 0, d * S))
    assert N % images_per_tile == 0
    num_tiles = N // images_per_tile
    Rt = images_per_tile * S
    M = N * S

    # bf16 inter-stage activations when the row tile is 16-row aligned (bf16 sublane
    # packing); fall back to f32 otherwise.
    act_dtype = jnp.bfloat16 if Rt % 16 == 0 else jnp.float32

    # ---- layout / weight prep (reshapes only; no full-tensor XLA transpose) ------
    x3 = x_nchw.reshape(N, Cin, S).astype(jnp.float32)              # metadata-only
    w1_mat = jnp.transpose(w1[:, :, 0, 0], (1, 0)).astype(jnp.bfloat16)   # (Cin, Cmid)
    w3_mat = jnp.transpose(w3[:, :, 0, 0], (1, 0)).astype(jnp.bfloat16)   # (Cmid, Cout)
    w2_mat = grouped_to_dense(wg2, cardinality).reshape(9 * Cmid, Cmid).astype(jnp.bfloat16)

    cp = pltpu.CompilerParams(
        dimension_semantics=("parallel",),       # tiles independent -> megacore-safe
        vmem_limit_bytes=vmem_limit,
    )
    stats_mid = jax.ShapeDtypeStruct((num_tiles * _STATS_ROWS, Cmid), jnp.float32)
    stats_out = jax.ShapeDtypeStruct((num_tiles * _STATS_ROWS, Cout), jnp.float32)

    # ---- stage 1: NCHW->rows, 1x1 conv, bf16 h1 + partial BN1 stats --------------
    h1, st1 = pl.pallas_call(
        _stage1_kernel,
        grid=(num_tiles,),
        in_specs=[_img_spec(images_per_tile, Cin, S), _resident_spec((Cin, Cmid))],
        out_specs=(_row_spec(Rt, Cmid), _stats_spec(Cmid)),
        out_shape=(jax.ShapeDtypeStruct((M, Cmid), act_dtype), stats_mid),
        compiler_params=cp,
    )(x3, w1_mat)
    s1, t1 = _fold_bn(st1, g1, b1, M)

    # ---- stage 2: BN1+ReLU, grouped 3x3 (fused big-K matmul), bf16 h2 + BN2 stats -
    h2, st2 = pl.pallas_call(
        functools.partial(_stage2_kernel, H=H, W=W),
        grid=(num_tiles,),
        in_specs=[_row_spec(Rt, Cmid), _resident_spec((1, Cmid)),
                  _resident_spec((1, Cmid)), _resident_spec((9 * Cmid, Cmid))],
        out_specs=(_row_spec(Rt, Cmid), _stats_spec(Cmid)),
        out_shape=(jax.ShapeDtypeStruct((M, Cmid), act_dtype), stats_mid),
        compiler_params=cp,
    )(h1, s1, t1, w2_mat)
    s2, t2 = _fold_bn(st2, g2, b2, M)

    # ---- stage 3: BN2+ReLU, 1x1 conv -> BN3 stats only (h3 never hits HBM) --------
    st3 = pl.pallas_call(
        _stage3_kernel,
        grid=(num_tiles,),
        in_specs=[_row_spec(Rt, Cmid), _resident_spec((1, Cmid)),
                  _resident_spec((1, Cmid)), _resident_spec((Cmid, Cout))],
        out_specs=_stats_spec(Cout),
        out_shape=stats_out,
        compiler_params=cp,
    )(h2, s2, t2, w3_mat)
    s3, t3 = _fold_bn(st3, g3, b3, M)

    # ---- stage 4: recompute h3, BN3 + identity shortcut + ReLU, NCHW store --------
    out3 = pl.pallas_call(
        _stage4_kernel,
        grid=(num_tiles,),
        in_specs=[_row_spec(Rt, Cmid), _resident_spec((1, Cmid)),
                  _resident_spec((1, Cmid)), _resident_spec((Cmid, Cout)),
                  _resident_spec((1, Cout)), _resident_spec((1, Cout)),
                  _img_spec(images_per_tile, Cin, S)],
        out_specs=_img_spec(images_per_tile, Cout, S),
        out_shape=jax.ShapeDtypeStruct((N, Cout, S), jnp.float32),
        compiler_params=cp,
    )(h2, s2, t2, w3_mat, s3, t3, x3)

    return out3.reshape(N, Cout, H, W)


# ----------------------------------------------------------------------------- reference
def reference_forward(x, params, cardinality):
    # Pure-JAX (XLA conv, f32) reference of the same math, in NCHW.
    w1, g1, b1, wg2, g2, b2, w3, g3, b3 = params

    def bn(h, g, b):
        mean = jnp.mean(h, axis=(0, 2, 3), keepdims=True)
        var = jnp.mean((h - mean) ** 2, axis=(0, 2, 3), keepdims=True)
        return ((h - mean) / jnp.sqrt(var + _EPS)) * g.reshape(1, -1, 1, 1) + b.reshape(1, -1, 1, 1)

    dn = ('NCHW', 'OIHW', 'NCHW')
    h = lax.conv_general_dilated(x, w1, (1, 1), 'VALID', dimension_numbers=dn)
    h = jax.nn.relu(bn(h, g1, b1))
    h = lax.conv_general_dilated(h, wg2, (1, 1), ((1, 1), (1, 1)),
                                 dimension_numbers=dn, feature_group_count=cardinality)
    h = jax.nn.relu(bn(h, g2, b2))
    h = lax.conv_general_dilated(h, w3, (1, 1), 'VALID', dimension_numbers=dn)
    h = bn(h, g3, b3)
    return jax.nn.relu(h + x)


if __name__ == "__main__":
    key = jax.random.PRNGKey(0)
    N, H, W = 2, 8, 8
    out_channels, cardinality, expansion = 16, 4, 4
    in_channels = out_channels * expansion            # identity shortcut path

    ks = jax.random.split(key, 10)
    w1 = 0.1 * jax.random.normal(ks[0], (out_channels, in_channels, 1, 1), jnp.float32)
    g1 = 1.0 + 0.1 * jax.random.normal(ks[1], (out_channels,), jnp.float32)
    b1 = 0.1 * jax.random.normal(ks[2], (out_channels,), jnp.float32)
    wg2 = 0.1 * jax.random.normal(ks[3], (out_channels, out_channels // cardinality, 3, 3), jnp.float32)
    g2 = 1.0 + 0.1 * jax.random.normal(ks[4], (out_channels,), jnp.float32)
    b2 = 0.1 * jax.random.normal(ks[5], (out_channels,), jnp.float32)
    w3 = 0.1 * jax.random.normal(ks[6], (in_channels, out_channels, 1, 1), jnp.float32)
    g3 = 1.0 + 0.1 * jax.random.normal(ks[7], (in_channels,), jnp.float32)
    b3 = 0.1 * jax.random.normal(ks[8], (in_channels,), jnp.float32)
    x = jax.random.normal(ks[9], (N, in_channels, H, W), jnp.float32)

    params = (w1, g1, b1, wg2, g2, b2, w3, g3, b3)

    # images_per_tile=1 -> grid of 2 row tiles (exercises the pipelined grid path
    # and gives an even tile count for the "parallel" axis).
    out = jax.block_until_ready(bottleneck_forward(x, params, cardinality, images_per_tile=1))
    ref = reference_forward(x, params, cardinality)

    assert out.shape == (N, in_channels, H, W)
    max_err = float(jnp.max(jnp.abs(out - ref)))
    # bf16 MXU operands + bf16 inter-stage activations vs pure-f32 XLA reference
    # -> loosened tolerance.
    assert jnp.allclose(out, ref, atol=5e-2, rtol=5e-2), f"max abs err = {max_err}"
    print("KERNEL_OK")
</pallas_src>

<mosaic_0001>
module attributes {stable_mosaic.version = 11 : i64} {
  func.func @_stage1_kernel(%arg0: i32, %arg1: memref<1x64x64xf32, #tpu.memory_space<vmem>>, %arg2: memref<64x16xbf16, #tpu.memory_space<vmem>>, %arg3: memref<64x16xbf16, #tpu.memory_space<vmem>>, %arg4: memref<8x16xf32, #tpu.memory_space<vmem>>) attributes {dimension_semantics = [#tpu.dimension_semantics<parallel>], iteration_bounds = array<i64: 2>, scalar_prefetch = 0 : i64, scratch_operands = 0 : i64, tpu.core_type = #tpu.core_type<tc>, window_params = [{transform_indices = @transform_0, window_bounds = array<i64: 1, 64, 64>}, {pipeline_mode = #tpu.pipeline_mode<synchronous>, transform_indices = @transform_1, window_bounds = array<i64: 64, 16>}, {transform_indices = @transform_2, window_bounds = array<i64: 64, 16>}, {transform_indices = @transform_3, window_bounds = array<i64: 8, 16>}]} {
    %c0 = arith.constant 0 : index
    %c0_0 = arith.constant 0 : index
    %c0_1 = arith.constant 0 : index
    %0 = vector.load %arg1[%c0, %c0_0, %c0_1] : memref<1x64x64xf32, #tpu.memory_space<vmem>>, vector<1x64x64xf32>
    %1 = vector.shape_cast %0 : vector<1x64x64xf32> to vector<64x64xf32>
    %2 = tpu.transpose %1, [1, 0] : vector<64x64xf32> -> vector<64x64xf32>
    %3 = arith.truncf %2 : vector<64x64xf32> to vector<64x64xbf16>
    %c0_2 = arith.constant 0 : index
    %c0_3 = arith.constant 0 : index
    %4 = vector.load %arg2[%c0_2, %c0_3] : memref<64x16xbf16, #tpu.memory_space<vmem>>, vector<64x16xbf16>
    %cst = arith.constant dense<0.000000e+00> : vector<64x16xf32>
    %5 = tpu.matmul %3, %4, %cst {dimension_numbers = #tpu.dot_dimension_numbers<[1], [0], [0], [1], [0, 0, 1, 1], [], []>} : vector<64x64xbf16>, vector<64x16xbf16>, vector<64x16xf32> -> vector<64x16xf32>
    %6 = arith.truncf %5 : vector<64x16xf32> to vector<64x16xbf16>
    %c0_4 = arith.constant 0 : index
    %c0_5 = arith.constant 0 : index
    %7 = vector.load %arg3[%c0_4, %c0_5] : memref<64x16xbf16, #tpu.memory_space<vmem>>, vector<64x16xbf16>
    tpu.vector_store %arg3[%c0_4, %c0_5], %6 {strides = array<i32>} : memref<64x16xbf16, #tpu.memory_space<vmem>>, vector<64x16xbf16>,
    %cst_6 = arith.constant dense<0.000000e+00> : vector<16xf32>
    %8 = vector.multi_reduction <add>, %5, %cst_6 [0] : vector<64x16xf32> to vector<16xf32>
    %9 = vector.shape_cast %8 : vector<16xf32> to vector<1x16xf32>
    %10 = arith.mulf %5, %5 : vector<64x16xf32>
    %cst_7 = arith.constant dense<0.000000e+00> : vector<16xf32>
    %11 = vector.multi_reduction <add>, %10, %cst_7 [0] : vector<64x16xf32> to vector<16xf32>
    %12 = vector.shape_cast %11 : vector<16xf32> to vector<1x16xf32>
    %cst_8 = arith.constant 0.000000e+00 : f32
    %13 = vector.broadcast %cst_8 : f32 to vector<6x16xf32>
    %14 = tpu.concatenate %9, %12, %13 in 0 : vector<1x16xf32>, vector<1x16xf32>, vector<6x16xf32> -> vector<8x16xf32>
    %c0_9 = arith.constant 0 : index
    %c0_10 = arith.constant 0 : index
    %15 = vector.load %arg4[%c0_9, %c0_10] : memref<8x16xf32, #tpu.memory_space<vmem>>, vector<8x16xf32>
    tpu.vector_store %arg4[%c0_9, %c0_10], %14 {strides = array<i32>} : memref<8x16xf32, #tpu.memory_space<vmem>>, vector<8x16xf32>,
    return
  }
  func.func @transform_0(%arg0: i32) -> (i32, i32, i32) {
    %c0_i32 = arith.constant 0 : i32
    %c0_i32_0 = arith.constant 0 : i32
    %c0_i32_1 = arith.constant 0 : i32
    return %arg0, %c0_i32, %c0_i32_0 : i32, i32, i32
  }
  func.func @transform_1(%arg0: i32) -> (i32, i32) {
    %c0_i32 = arith.constant 0 : i32
    %c0_i32_0 = arith.constant 0 : i32
    %c0_i32_1 = arith.constant 0 : i32
    return %c0_i32, %c0_i32_0 : i32, i32
  }
  func.func @transform_2(%arg0: i32) -> (i32, i32) {
    %c0_i32 = arith.constant 0 : i32
    %c0_i32_0 = arith.constant 0 : i32
    return %arg0, %c0_i32 : i32, i32
  }
  func.func @transform_3(%arg0: i32) -> (i32, i32) {
    %c0_i32 = arith.constant 0 : i32
    %c0_i32_0 = arith.constant 0 : i32
    return %arg0, %c0_i32 : i32, i32
  }
}

</mosaic_0001>

<llo_original>
// kernel: tpu_custom_call.1
$region0: #{tpu_custom_call.1}
  #allocation0 [shape = 'u32[]', space=smem, size = 0x4, offset = 0x4, fixed_abs, tag = 'smem constant byte address 0x4 - core index']
  #allocation1 [shape = 'u32[144,128]{1,0:T(1,128)}', space=vmem, size = 0x12000, scoped, tag = 'internal scratch']
  %s0 = inlined_call_operand.hbm [shape: f32[2,64,64], index: 0, kind: input, shape index: {}]
  %s1 = inlined_call_operand.vmem [shape: bf16[64,16], index: 1, kind: input, shape index: {}]
  %s2 = inlined_call_operand.vmem [shape: bf16[128,16], index: 2, kind: output, shape index: {0}]
  %s3 = inlined_call_operand.hbm [shape: f32[16,16], index: 3, kind: output, shape index: {1}]
  %4 = xla_tuple %s2, %s3
  %s5 = sld [smem:[#allocation0]]
  $region53: #{tpu_custom_call.1} parent=0
    _
  %s7 = ssub.s32 1, %s5
  %s8 = scalar_select 0, %s7, %s5
  $region1: #{tpu_custom_call.1} parent=0
    #allocation2 [shape = 'u8[65536]{0}', space=vmem, size = 0x10000, scoped, tag = 'input window, operand 0']
    #allocation3 [shape = 's32[2]{0}', space=sflag, size = 0x8, scoped, tag = 'scoped memory for tpu_custom_call.1']
    #allocation4 [shape = 's32[2]{0}', space=sflag, size = 0x8, scoped, tag = 'scoped memory for tpu_custom_call.1']
    #allocation5 [shape = 'u8[8192]{0}', space=vmem, size = 0x2000, scoped, tag = 'output window, operand 1']
    %9 = vsyncpa [#allocation3], 0
    %s10 = scalar_lea.sflag [#allocation3], 1
    %11 = vsyncpa %s10, 0
    %12 = vsyncpa [#allocation4], 0
    %s13 = scalar_lea.sflag [#allocation4], 1
    %14 = vsyncpa %s13, 0
    loop: start=0, step=1, limit=4
    $region2: #{tpu_custom_call.1} parent=1 // loop_pre_header
      _
    $region3: #{tpu_custom_call.1} parent=1 // loop_header
      %s16 = sphi 0, %s20
      %p17 = scmp.ge.s32.totalorder %s16, 4
      %s26 = sphi 0, %s28
      %s29 = sphi 0, %s26
      %s30 = sphi 0, %s29
      %s46 = sphi 0, %s30
      %s50 = sphi 0, %s50
      %s52 = sphi 0, %s50
      %s53 = sphi 0, %s52
      %s67 = sphi 0, %s53
      %s73 = sphi 0, %s75
      %s76 = sphi 0, %s73
      %s77 = sphi 0, %s76
      %s93 = sphi 0, %s77
      %s99 = sphi 0, %s101
      %s102 = sphi 0, %s99
      %s103 = sphi 0, %s102
      %s119 = sphi 0, %s103
    $region4: #{tpu_custom_call.1} parent=1 // loop_header_branch
      %19 = sbr.rel (%p17) target = $region8
    $region5: #{tpu_custom_call.1} parent=1 // loop_body
      %s21 = ssub.s32 %s16, 1
      %s22 = ssub.s32 %s16, 2
      %s23 = sadd.s32 %s16, 1
      %s24 = ssub.s32 %s16, %s23
      %p25 = scmp.eq.s32.totalorder %s24, 0
      %s27 = sadd.s32 %s26, 1
      %s28 = scalar_select %p25, %s26, %s27
      %p31 = pneg %p25
      %p32 = scmp.eq.s32.totalorder %s16, 1
      %p33 = por %p31, %p32
      %p34 = scmp.ne.s32.totalorder %s26, %s29
      %p35 = scmp.eq.s32.totalorder %s16, 0
      %p36 = por %p34, %p35
      %p37 = scmp.ne.s32.totalorder %s26, %s29
      %p38 = scmp.eq.s32.totalorder %s21, 1
      %p39 = por %p37, %p38
      %p40 = scmp.ne.s32.totalorder %s29, %s30
      %p41 = scmp.eq.s32.totalorder %s21, 0
      %p42 = por %p40, %p41
      %p43 = scmp.ne.s32.totalorder %s29, %s30
      %p44 = scmp.eq.s32.totalorder %s22, 1
      %p45 = por %p43, %p44
      %p47 = scmp.ne.s32.totalorder %s30, %s46
      %p48 = scmp.eq.s32.totalorder %s22, 0
      %p49 = por %p47, %p48
      %s51 = sadd.s32 %s50, 1
      %p54 = scmp.eq.s32.totalorder %s16, 1
      %p55 = scmp.ne.s32.totalorder %s50, %s52
      %p56 = scmp.eq.s32.totalorder %s16, 0
      %p57 = por %p55, %p56
      %p58 = scmp.ne.s32.totalorder %s50, %s52
      %p59 = scmp.eq.s32.totalorder %s21, 1
      %p60 = por %p58, %p59
      %p61 = scmp.ne.s32.totalorder %s52, %s53
      %p62 = scmp.eq.s32.totalorder %s21, 0
      %p63 = por %p61, %p62
      %p64 = scmp.ne.s32.totalorder %s52, %s53
      %p65 = scmp.eq.s32.totalorder %s22, 1
      %p66 = por %p64, %p65
      %p68 = scmp.ne.s32.totalorder %s53, %s67
      %p69 = scmp.eq.s32.totalorder %s22, 0
      %p70 = por %p68, %p69
      %s71 = ssub.s32 %s16, %s23
      %p72 = scmp.eq.s32.totalorder %s71, 0
      %s74 = sadd.s32 %s73, 1
      %s75 = scalar_select %p72, %s73, %s74
      %p78 = pneg %p72
      %p79 = scmp.eq.s32.totalorder %s16, 1
      %p80 = por %p78, %p79
      %p81 = scmp.ne.s32.totalorder %s73, %s76
      %p82 = scmp.eq.s32.totalorder %s16, 0
      %p83 = por %p81, %p82
      %p84 = scmp.ne.s32.totalorder %s73, %s76
      %p85 = scmp.eq.s32.totalorder %s21, 1
      %p86 = por %p84, %p85
      %p87 = scmp.ne.s32.totalorder %s76, %s77
      %p88 = scmp.eq.s32.totalorder %s21, 0
      %p89 = por %p87, %p88
      %p90 = scmp.ne.s32.totalorder %s76, %s77
      %p91 = scmp.eq.s32.totalorder %s22, 1
      %p92 = por %p90, %p91
      %p94 = scmp.ne.s32.totalorder %s77, %s93
      %p95 = scmp.eq.s32.totalorder %s22, 0
      %p96 = por %p94, %p95
      %s97 = ssub.s32 %s16, %s23
      %p98 = scmp.eq.s32.totalorder %s97, 0
      %s100 = sadd.s32 %s99, 1
      %s101 = scalar_select %p98, %s99, %s100
      %p104 = pneg %p98
      %p105 = scmp.eq.s32.totalorder %s16, 1
      %p106 = por %p104, %p105
      %p107 = scmp.ne.s32.totalorder %s99, %s102
      %p108 = scmp.eq.s32.totalorder %s16, 0
      %p109 = por %p107, %p108
      %p110 = scmp.ne.s32.totalorder %s99, %s102
      %p111 = scmp.eq.s32.totalorder %s21, 1
      %p112 = por %p110, %p111
      %p113 = scmp.ne.s32.totalorder %s102, %s103
      %p114 = scmp.eq.s32.totalorder %s21, 0
      %p115 = por %p113, %p114
      %p116 = scmp.ne.s32.totalorder %s102, %s103
      %p117 = scmp.eq.s32.totalorder %s22, 1
      %p118 = por %p116, %p117
      %p120 = scmp.ne.s32.totalorder %s103, %s119
      %p121 = scmp.eq.s32.totalorder %s22, 0
      %p122 = por %p120, %p121
      %p123 = scmp.le.s32.totalorder 1, %s16
      %p124 = scmp.lt.s32.totalorder %s16, 3
      %p125 = pnand %p123, %p124
      %p126 = pneg %p125
      // Predicated region
      $region9: #{tpu_custom_call.1} parent=5 // pred_check
        _
      $region10: #{tpu_custom_call.1} parent=5 // pred_check_branch
        %128 = sbr.rel (%p125) target = $region12
      $region11: #{tpu_custom_call.1} parent=5 // pred_region
        %s129 = ssub.s32 %s16, 1
        // Predicated region
        $region13: #{tpu_custom_call.1} parent=11 // pred_check
          %p130 = pneg %p63
        $region14: #{tpu_custom_call.1} parent=11 // pred_check_branch
          %132 = sbr.rel (%p130) target = $region16
        $region15: #{tpu_custom_call.1} parent=11 // pred_region
          _
        $region16: #{tpu_custom_call.1} parent=11 // pred_fallthru
          _
      $region12: #{tpu_custom_call.1} parent=5 // pred_fallthru
        _
      %p133 = scmp.lt.s32.totalorder %s16, 2
      // Predicated region
      $region17: #{tpu_custom_call.1} parent=5 // pred_check
        %p134 = pneg %p133
      $region18: #{tpu_custom_call.1} parent=5 // pred_check_branch
        %136 = sbr.rel (%p134) target = $region20
      $region19: #{tpu_custom_call.1} parent=5 // pred_region
        // Predicated region
        $region21: #{tpu_custom_call.1} parent=19 // pred_check
          %p137 = pneg %p36
        $region22: #{tpu_custom_call.1} parent=19 // pred_check_branch
          %139 = sbr.rel (%p137) target = $region24
        $region23: #{tpu_custom_call.1} parent=19 // pred_region
          %s140 = sand.u32 %s26, 1
          %s141 = scalar_lea.sflag [#allocation3], %s140
          %s142 = sand.u32 %s26, 1
          %s143 = smul.addr %s142, 64
          %s144 = scalar_lea.vmem [#allocation2], %s143
          %s146 = ssub.s32 1024, 1024
          %147 = vsyncadd %s141, %s146
          %s148 = smul.addr %s16, 8
          %s149 = smul.addr %s148, 128
          %s150 = scalar_lea.hbm %s0, %s149
          %s151 = sshll.u32 %s144, 4
          %s152 = int_to_ptr.vmem [resolvable:$true] %s151
          %157 = dma.hbm_to_vmem [thread:$0]  %s150, 1024, %s152, %s141, 128, 128, 8
        $region24: #{tpu_custom_call.1} parent=19 // pred_fallthru
          _
      $region20: #{tpu_custom_call.1} parent=5 // pred_fallthru
        _
      %p158 = scmp.le.s32.totalorder 1, %s16
      %p159 = scmp.lt.s32.totalorder %s16, 3
      %p160 = pnand %p158, %p159
      %p161 = pneg %p160
      // Predicated region
      $region25: #{tpu_custom_call.1} parent=5 // pred_check
        _
      $region26: #{tpu_custom_call.1} parent=5 // pred_check_branch
        %163 = sbr.rel (%p160) target = $region28
      $region27: #{tpu_custom_call.1} parent=5 // pred_region
        %s164 = ssub.s32 %s16, 1
        %s165 = sand.u32 %s29, 1
        %s166 = scalar_lea.sflag [#allocation3], %s165
        %s167 = sand.u32 %s29, 1
        %s168 = smul.addr %s167, 64
        %s169 = scalar_lea.vmem [#allocation2], %s168
        // Predicated region
        $region29: #{tpu_custom_call.1} parent=27 // pred_check
          %p170 = pneg %p42
        $region30: #{tpu_custom_call.1} parent=27 // pred_check_branch
          %172 = sbr.rel (%p170) target = $region32
        $region31: #{tpu_custom_call.1} parent=27 // pred_region
          %173 = dma.done %s166, 1024
        $region32: #{tpu_custom_call.1} parent=27 // pred_fallthru
          _
        %s174 = sand.u32 %s29, 1
        %s175 = scalar_lea.sflag [#allocation3], %s174
        %s176 = sand.u32 %s29, 1
        %s177 = smul.addr %s176, 64
        %s178 = scalar_lea.vmem [#allocation2], %s177
        %p179 = pneg %p42
        %p180 = pneg %p39
        %p181 = pneg %p63
        %p182 = pneg %p60
        %p183 = pneg %p89
        %p184 = pneg %p86
        %s185 = smul.u32 8, %s21
        %p186 = scmp.lt.s32.totalorder %s185, 15
        %s187 = scalar_select %p186, %s185, 15
        %s188 = smul.addr %s187, 4
        %s189 = scalar_lea.vmem %s2, %s188
        %p190 = pneg %p115
        %p191 = pneg %p112
        %s192 = sand.u32 %s102, 1
        %s193 = scalar_lea.sflag [#allocation4], %s192
        %s194 = sand.u32 %s102, 1
        %s195 = smul.addr %s194, 8
        %s196 = scalar_lea.vmem [#allocation5], %s195
        %s197 = smul.u32 8, %s21
        %p198 = scmp.lt.s32.totalorder %s197, 15
        %s199 = scalar_select %p198, %s197, 15
        %s200 = smul.addr %s199, 4
        %s201 = scalar_lea.vmem %s2, %s200
        %s202 = smul.u32 8, %s21
        %v204 = vld [vmem:[%s169] sm:$0xff]
        %v205 = vld [vmem:[%s169 + $0x8] sm:$0xff]
        %v206 = vld [vmem:[%s169 + $0x10] sm:$0xff]
        %v207 = vld [vmem:[%s169 + $0x18] sm:$0xff]
        %v208 = vld [vmem:[%s169 + $0x20] sm:$0xff]
        %v209 = vld [vmem:[%s169 + $0x28] sm:$0xff]
        %v210 = vld [vmem:[%s169 + $0x30] sm:$0xff]
        %v211 = vld [vmem:[%s169 + $0x38] sm:$0xff]
        %212 = vxpose.xlu0.b32.start [1/16] %v204, 128
        %213 = vxpose.xlu0.b32.cont [2/16] %v205, 128
        %214 = vxpose.xlu0.b32.cont [3/16] %v206, 128
        %215 = vxpose.xlu0.b32.cont [4/16] %v207, 128
        %216 = vxpose.xlu0.b32.cont [5/16] %v208, 128
        %217 = vxpose.xlu0.b32.cont [6/16] %v209, 128
        %218 = vxpose.xlu0.b32.cont [7/16] %v210, 128
        %219 = vxpose.xlu0.b32.cont [8/16] %v211, 128
        %220 = vxpose.xlu0.b32.cont [9/16] 0.0, 128
        %221 = vxpose.xlu0.b32.cont [10/16] 0.0, 128
        %222 = vxpose.xlu0.b32.cont [11/16] 0.0, 128
        %223 = vxpose.xlu0.b32.cont [12/16] 0.0, 128
        %224 = vxpose.xlu0.b32.cont [13/16] 0.0, 128
        %225 = vxpose.xlu0.b32.cont [14/16] 0.0, 128
        %226 = vxpose.xlu0.b32.cont [15/16] 0.0, 128
        %227 = vxpose.xlu0.b32.end [16/16] 0.0, 128
        %v228 = vpop.trf.xlu0
        %v229 = vpop.trf.xlu0
        %v230 = vpop.trf.xlu0
        %v231 = vpop.trf.xlu0
        %v232 = vpop.trf.xlu0
        %v233 = vpop.trf.xlu0
        %v234 = vpop.trf.xlu0
        %v235 = vpop.trf.xlu0
        %v236 = vpop.trf.xlu0
        %v237 = vpop.trf.xlu0
        %v238 = vpop.trf.xlu0
        %v239 = vpop.trf.xlu0
        %v240 = vpop.trf.xlu0
        %v241 = vpop.trf.xlu0
        %v242 = vpop.trf.xlu0
        %v243 = vpop.trf.xlu0
        %v244 = vpack.c.bf16 %v229, %v228
        %v245 = vpack.c.bf16 %v231, %v230
        %v246 = vpack.c.bf16 %v233, %v232
        %v247 = vpack.c.bf16 %v235, %v234
        %v248 = vld [vmem:[%s1] sm:$0xf]
        %v249 = vld [vmem:[%s1 + $0x4] sm:$0xf]
        %v250 = vld [vmem:[%s1 + $0x8] sm:$0xf]
        %v251 = vld [vmem:[%s1 + $0xc] sm:$0xf]
        %v252 = vld [vmem:[%s1 + $0x10] sm:$0xf]
        %v253 = vld [vmem:[%s1 + $0x14] sm:$0xf]
        %v254 = vld [vmem:[%s1 + $0x18] sm:$0xf]
        %v255 = vld [vmem:[%s1 + $0x1c] sm:$0xf]
        %v264 = vunpack.c.l.b16 %v248
        %v265 = vunpack.c.l.b16 %v249
        %v266 = vunpack.c.l.b16 %v250
        %v267 = vunpack.c.l.b16 %v251
        %v268 = vunpack.c.l.b16 %v252
        %v269 = vunpack.c.l.b16 %v253
        %v270 = vunpack.c.l.b16 %v254
        %v271 = vunpack.c.l.b16 %v255
        %v272 = vpack.c.b16 %v265, %v264
        %v273 = vpack.c.b16 %v267, %v266
        %v274 = vpack.c.b16 %v269, %v268
        %v275 = vpack.c.b16 %v271, %v270
        %vm280 = vcmask 523264
        %v282 = vsel %vm280, %v244, 0
        %v285 = vsel %vm280, %v245, 0
        %v288 = vsel %vm280, %v246, 0
        %v291 = vsel %vm280, %v247, 0
        %293 = vmatprep.subr.bf16.mxu0 0
        %294 = vmatpush1.bf16.msra.mxu0 0
        %295 = vmatprep.subr.bf16.mxu0 0
        %296 = vmatpush1.bf16.msra.mxu0 0
        %297 = vmatprep.subr.bf16.mxu0 0
        %298 = vmatpush1.bf16.msra.mxu0 0
        %299 = vmatprep.subr.bf16.mxu0 0
        %300 = vmatpush1.bf16.msra.mxu0 0
        %301 = vmatprep.subr.bf16.mxu0 0
        %302 = vmatpush1.bf16.msra.mxu0 %v275
        %303 = vmatprep.subr.bf16.mxu0 0
        %304 = vmatpush1.bf16.msra.mxu0 %v274
        %305 = vmatprep.subr.bf16.mxu0 0
        %306 = vmatpush1.bf16.msra.mxu0 %v273
        %307 = vmatprep.subr.bf16.mxu0 0
        %308 = vmatpush1.bf16.msra.mxu0 %v272
        %309 = vmatprep.subr.bf16.mxu0 0
        %310 = vmatpush2.bf16.msra.mxu0 0
        %311 = vmatprep.subr.bf16.mxu0 0
        %312 = vmatpush2.bf16.msra.mxu0 0
        %313 = vmatprep.subr.bf16.mxu0 0
        %314 = vmatpush2.bf16.msra.mxu0 0
        %315 = vmatprep.subr.bf16.mxu0 0
        %316 = vmatpush2.bf16.msra.mxu0 0
        %317 = vmatprep.subr.bf16.mxu0 0
        %318 = vmatpush2.bf16.msra.mxu0 0
        %319 = vmatprep.subr.bf16.mxu0 0
        %320 = vmatpush2.bf16.msra.mxu0 0
        %321 = vmatprep.subr.bf16.mxu0 0
        %322 = vmatpush2.bf16.msra.mxu0 0
        %323 = vmatprep.subr.bf16.mxu0 0
        %324 = vmatpush2.bf16.msra.mxu0 0
        %325 = vmatprep.mubr.bf16.mxu0 0
        %326 = vmatmul.mubr.bf16.gmra.mxu0 %v282
        %v327 = vpop.f32.mrf.mxu0
        %v328 = vadd.f32 0.0, %v327
        %v329 = vpop.f32.mrf.mxu0
        %v330 = vpop.f32.mrf.mxu0
        %v331 = vadd.f32 0.0, %v330
        %v332 = vpop.f32.mrf.mxu0
        %333 = vmatprep.mubr.bf16.mxu0 0
        %334 = vmatmul.mubr.bf16.gmra.mxu0 %v285
        %v335 = vpop.f32.mrf.mxu0
        %v336 = vadd.f32 0.0, %v335
        %v337 = vpop.f32.mrf.mxu0
        %v338 = vpop.f32.mrf.mxu0
        %v339 = vadd.f32 0.0, %v338
        %v340 = vpop.f32.mrf.mxu0
        %341 = vmatprep.mubr.bf16.mxu0 0
        %342 = vmatmul.mubr.bf16.gmra.mxu0 %v288
        %v343 = vpop.f32.mrf.mxu0
        %v344 = vadd.f32 0.0, %v343
        %v345 = vpop.f32.mrf.mxu0
        %v346 = vpop.f32.mrf.mxu0
        %v347 = vadd.f32 0.0, %v346
        %v348 = vpop.f32.mrf.mxu0
        %349 = vmatprep.mubr.bf16.mxu0 0
        %350 = vmatmul.mubr.bf16.gmra.mxu0 %v291
        %v351 = vpop.f32.mrf.mxu0
        %v352 = vadd.f32 0.0, %v351
        %v353 = vpop.f32.mrf.mxu0
        %v354 = vpop.f32.mrf.mxu0
        %v355 = vadd.f32 0.0, %v354
        %v356 = vpop.f32.mrf.mxu0
        %357 = vdwg.mxu0
        %v358 = vpack.c.bf16 %v331, %v328
        %v359 = vpack.c.bf16 %v339, %v336
        %v360 = vpack.c.bf16 %v347, %v344
        %v361 = vpack.c.bf16 %v355, %v352
        %v366 = vunpack.c.l.b16 %v358
        %v367 = vunpack.c.h.b16 %v358
        %v368 = vunpack.c.l.b16 %v359
        %v369 = vunpack.c.h.b16 %v359
        %v370 = vunpack.c.l.b16 %v360
        %v371 = vunpack.c.h.b16 %v360
        %v372 = vunpack.c.l.b16 %v361
        %v373 = vunpack.c.h.b16 %v361
        %v374 = vpack.c.b16 %v366, %v366
        %v375 = vpack.c.b16 %v367, %v367
        %v376 = vpack.c.b16 %v368, %v368
        %v377 = vpack.c.b16 %v369, %v369
        %v378 = vpack.c.b16 %v370, %v370
        %v379 = vpack.c.b16 %v371, %v371
        %v380 = vpack.c.b16 %v372, %v372
        %v381 = vpack.c.b16 %v373, %v373
        %vm390 = vcmask 125952
        %391 = vst.msk [vmem:[%s201] sm:$0xf] %vm390, %v374
        %392 = vst.msk [vmem:[%s201 + $0x4] sm:$0xf] %vm390, %v375
        %393 = vst.msk [vmem:[%s201 + $0x8] sm:$0xf] %vm390, %v376
        %394 = vst.msk [vmem:[%s201 + $0xc] sm:$0xf] %vm390, %v377
        %395 = vst.msk [vmem:[%s201 + $0x10] sm:$0xf] %vm390, %v378
        %396 = vst.msk [vmem:[%s201 + $0x14] sm:$0xf] %vm390, %v379
        %397 = vst.msk [vmem:[%s201 + $0x18] sm:$0xf] %vm390, %v380
        %398 = vst.msk [vmem:[%s201 + $0x1c] sm:$0xf] %vm390, %v381
        %vm399 = vcmask 130048
        %v400 = vsel %vm399, %v328, 0.0
        %v401 = vsel %vm399, %v331, 0.0
        %v402 = vadd.f32 %v400, %v401
        %v403 = vsel %vm399, %v336, 0.0
        %v404 = vadd.f32 %v402, %v403
        %v405 = vsel %vm399, %v339, 0.0
        %v406 = vadd.f32 %v404, %v405
        %v407 = vsel %vm399, %v344, 0.0
        %v408 = vadd.f32 %v406, %v407
        %v409 = vsel %vm399, %v347, 0.0
        %v410 = vadd.f32 %v408, %v409
        %v411 = vsel %vm399, %v352, 0.0
        %v412 = vadd.f32 %v410, %v411
        %v413 = vsel %vm399, %v355, 0.0
        %v414 = vadd.f32 %v412, %v413
        %v415 = vrot.slane %v414, 4
        %v416 = vadd.f32 %v414, %v415
        %v417 = vrot.slane %v416, 2
        %v418 = vadd.f32 %v416, %v417
        %v419 = vrot.slane %v418, 1
        %v420 = vadd.f32 %v418, %v419
        %v421 = vmul.f32 %v328, %v328
        %v422 = vmul.f32 %v331, %v331
        %v423 = vmul.f32 %v336, %v336
        %v424 = vmul.f32 %v339, %v339
        %v425 = vmul.f32 %v344, %v344
        %v426 = vmul.f32 %v347, %v347
        %v427 = vmul.f32 %v352, %v352
        %v428 = vmul.f32 %v355, %v355
        %v429 = vsel %vm399, %v421, 0.0
        %v430 = vsel %vm399, %v422, 0.0
        %v431 = vadd.f32 %v429, %v430
        %v432 = vsel %vm399, %v423, 0.0
        %v433 = vadd.f32 %v431, %v432
        %v434 = vsel %vm399, %v424, 0.0
        %v435 = vadd.f32 %v433, %v434
        %v436 = vsel %vm399, %v425, 0.0
        %v437 = vadd.f32 %v435, %v436
        %v438 = vsel %vm399, %v426, 0.0
        %v439 = vadd.f32 %v437, %v438
        %v440 = vsel %vm399, %v427, 0.0
        %v441 = vadd.f32 %v439, %v440
        %v442 = vsel %vm399, %v428, 0.0
        %v443 = vadd.f32 %v441, %v442
        %v444 = vrot.slane %v443, 4
        %v445 = vadd.f32 %v443, %v444
        %v446 = vrot.slane %v445, 2
        %v447 = vadd.f32 %v445, %v446
        %v448 = vrot.slane %v447, 1
        %v449 = vadd.f32 %v447, %v448
        %vm450 = vcmask 1040384
        %v451 = vsel %vm450, %v420, %v449
        %vm452 = vcmask 1041408
        %v453 = vsel %vm452, %v451, 0.0
        %454 = vst.msk [vmem:[%s196] sm:$0xff] %vm399, %v453
        %s455 = smul.u32 8, %s21
        %p456 = scmp.lt.s32.totalorder %s455, 15
        %s457 = scalar_select %p456, %s455, 15
        %s458 = smul.addr %s457, 4
        %s459 = scalar_lea.vmem %s2, %s458
        %s460 = sand.u32 %s102, 1
        %s461 = scalar_lea.sflag [#allocation4], %s460
        %s462 = sand.u32 %s102, 1
        %s463 = smul.addr %s462, 8
        %s464 = scalar_lea.vmem [#allocation5], %s463
        // Predicated region
        $region33: #{tpu_custom_call.1} parent=27 // pred_check
          %p465 = pneg %p86
        $region34: #{tpu_custom_call.1} parent=27 // pred_check_branch
          %467 = sbr.rel (%p465) target = $region36
        $region35: #{tpu_custom_call.1} parent=27 // pred_region
          %s468 = smul.u32 8, %s21
        $region36: #{tpu_custom_call.1} parent=27 // pred_fallthru
          _
        // Predicated region
        $region37: #{tpu_custom_call.1} parent=27 // pred_check
          %p469 = pneg %p112
        $region38: #{tpu_custom_call.1} parent=27 // pred_check_branch
          %471 = sbr.rel (%p469) target = $region40
        $region39: #{tpu_custom_call.1} parent=27 // pred_region
          %s473 = ssub.s32 128, 128
          %474 = vsyncadd %s461, %s473
          %s475 = smul.addr %s21, 128
          %s476 = scalar_lea.hbm %s3, %s475
          %s478 = sshll.u32 %s464, 4
          %s479 = int_to_ptr.vmem [resolvable:$true] %s478
          %481 = dma.vmem_to_hbm [thread:$0]  %s479, 128, %s476, %s461
        $region40: #{tpu_custom_call.1} parent=27 // pred_fallthru
          _
      $region28: #{tpu_custom_call.1} parent=5 // pred_fallthru
        _
      %p482 = scmp.le.s32.totalorder 2, %s16
      // Predicated region
      $region41: #{tpu_custom_call.1} parent=5 // pred_check
        %p483 = pneg %p482
      $region42: #{tpu_custom_call.1} parent=5 // pred_check_branch
        %485 = sbr.rel (%p483) target = $region44
      $region43: #{tpu_custom_call.1} parent=5 // pred_region
        %s486 = ssub.s32 %s16, 2
        // Predicated region
        $region45: #{tpu_custom_call.1} parent=43 // pred_check
          %p487 = pneg %p92
        $region46: #{tpu_custom_call.1} parent=43 // pred_check_branch
          %489 = sbr.rel (%p487) target = $region48
        $region47: #{tpu_custom_call.1} parent=43 // pred_region
          %s490 = smul.u32 8, %s22
          %p491 = scmp.lt.s32.totalorder %s490, 15
          %s492 = scalar_select %p491, %s490, 15
          %s493 = smul.addr %s492, 4
          %s494 = scalar_lea.vmem %s2, %s493
        $region48: #{tpu_custom_call.1} parent=43 // pred_fallthru
          _
        // Predicated region
        $region49: #{tpu_custom_call.1} parent=43 // pred_check
          %p495 = pneg %p118
        $region50: #{tpu_custom_call.1} parent=43 // pred_check_branch
          %497 = sbr.rel (%p495) target = $region52
        $region51: #{tpu_custom_call.1} parent=43 // pred_region
          %s498 = sand.u32 %s103, 1
          %s499 = scalar_lea.sflag [#allocation4], %s498
          %s500 = sand.u32 %s103, 1
          %s501 = smul.addr %s500, 8
          %s502 = scalar_lea.vmem [#allocation5], %s501
          %503 = dma.done %s499, 128
        $region52: #{tpu_custom_call.1} parent=43 // pred_fallthru
          _
      $region44: #{tpu_custom_call.1} parent=5 // pred_fallthru
        _
    $region6: #{tpu_custom_call.1} parent=1 // loop_footer
      %s20 = sadd.s32 1, %s16
    $region7: #{tpu_custom_call.1} parent=1 // loop_footer_branch
      %15 = sbr.rel target = $region3
    $region8: #{tpu_custom_call.1} parent=1 // loop_exit
      _
    %504 = vsyncpa [#allocation3], 1
    %s505 = scalar_lea.sflag [#allocation3], 1
    %506 = vsyncpa %s505, 1
    %507 = vsyncpa [#allocation4], 1
    %s508 = scalar_lea.sflag [#allocation4], 1
    %509 = vsyncpa %s508, 1

</llo_original>
